<compile_context>
chip_gen: v7x
topology: tpu7x:2x2x1
jax: 0.10.0
libtpu: 0.0.40
codegen_flags: <defaults>
</compile_context>

<pallas_src>
import jax
import jax.numpy as jnp
from jax.experimental import pallas as pl
from jax.experimental.pallas import tpu as pltpu


def _round_up(n, m):
    return ((n + m - 1) // m) * m


def _cdiv(a, b):
    return (a + b - 1) // b


_VMEM_BLOCK_BUDGET = 16 * 1024 * 1024   # target for double-buffered in+out blocks
_VMEM_LIMIT_CAP = 32 * 1024 * 1024      # <= half of v7x's 64 MiB physical VMEM


def _choose_tiling(BC, HW, H, itemsize):
    # Padded-VMEM bytes per row of the x block + the out block (lane dim pads
    # to a multiple of 128), times 2 for Pallas double buffering.
    bytes_per_row = 2 * (_round_up(HW, 128) + _round_up(H, 128)) * itemsize
    bc_tile = max(8, (_VMEM_BLOCK_BUDGET // bytes_per_row) // 8 * 8)
    bc_tile = min(bc_tile, _round_up(BC, 8))
    num_blocks = _cdiv(BC, bc_tile)
    # Keep >= 2 (and even) blocks so the "parallel" grid axis can split evenly
    # across both v7x TensorCores.
    if num_blocks == 1 and BC >= 16:
        num_blocks = 2
    if num_blocks > 1 and num_blocks % 2 != 0:
        num_blocks += 1
    bc_tile = _round_up(_cdiv(BC, num_blocks), 8)
    grid = _cdiv(BC, bc_tile)
    vmem_need = bc_tile * bytes_per_row + (2 << 20)   # + p/sel/internal headroom
    vmem_limit = int(min(max(2 * vmem_need, 16 << 20), _VMEM_LIMIT_CAP))
    return bc_tile, grid, vmem_limit


def softpool_kernel(p_ref, sel_ref, x_ref, o_ref):
    # p_ref:   (1, HW)   f32, resident parameter row (same block every step)
    # sel_ref: (HW, H)   f32, resident selector: sel[k, h] = 1 iff k // W == h
    # x_ref:   (T, HW)   one tile of rows of the fused B*C axis
    # o_ref:   (T, H)
    x = x_ref[...].astype(jnp.float32)                    # (T, HW)
    z = x * p_ref[...]                                     # sublane-broadcast of p

    # numerically-stable softmax over the joint (H, W) lane axis, per row
    m = jnp.max(z, axis=1, keepdims=True)                  # (T, 1)
    e = jnp.exp(z - m)                                     # (T, HW)
    s = jnp.sum(e, axis=1, keepdims=True)                  # (T, 1)

    # numerator: per-h sums over W of x * e, done on the MXU via the selector
    num = jnp.dot(x * e, sel_ref[...],
                  preferred_element_type=jnp.float32)      # (T, H)

    inv = pl.reciprocal(s, approx=False)                   # exact divide for parity
    o_ref[...] = (num * inv).astype(o_ref.dtype)


def softpool(x, p):
    """x: (B, C, H, W), p: (1, 1, H, W) -> (B, C, H, 1); output dtype == x.dtype."""
    B, C, H, W = x.shape
    assert p.shape == (1, 1, H, W)
    BC, HW = B * C, H * W

    x2 = x.reshape(BC, HW)                                 # free view of NCHW layout
    p2 = p.reshape(1, HW).astype(jnp.float32)
    # Block-diagonal selector so the MXU does the grouped W-sums in one matmul.
    sel = (jnp.arange(HW)[:, None] // W
           == jnp.arange(H)[None, :]).astype(jnp.float32)  # (HW, H)

    bc_tile, grid, vmem_limit = _choose_tiling(BC, HW, H, x.dtype.itemsize)

    out = pl.pallas_call(
        softpool_kernel,
        out_shape=jax.ShapeDtypeStruct((BC, H), x.dtype),
        grid_spec=pl.GridSpec(
            grid=(grid,),
            in_specs=[
                pl.BlockSpec((1, HW), lambda i: (0, 0)),        # p: tiny, resident
                pl.BlockSpec((HW, H), lambda i: (0, 0)),        # sel: tiny, resident
                pl.BlockSpec((bc_tile, HW), lambda i: (i, 0)),  # x row tile
            ],
            out_specs=pl.BlockSpec((bc_tile, H), lambda i: (i, 0)),
        ),
        compiler_params=pltpu.CompilerParams(
            dimension_semantics=("parallel",),
            vmem_limit_bytes=vmem_limit,
        ),
    )(p2, sel, x2)

    return out.reshape(B, C, H, 1)                          # free view; no transpose


def softpool_ref(x, p):
    z = p * x
    z = z.reshape(*z.shape[:-2], -1)
    w = jax.nn.softmax(z, axis=-1).reshape(x.shape)
    return jnp.sum(x * w, axis=-1, keepdims=True)


if __name__ == "__main__":
    key = jax.random.PRNGKey(0)
    kp, kx1, kx2, kx3 = jax.random.split(key, 4)

    H, W = 4, 12                  # SoftPool(size=(4, 12))
    p = jax.random.normal(kp, (1, 1, H, W), dtype=jnp.float32) * 0.1

    # small shape consistent with the module
    B, C = 2, 4
    x = jax.random.normal(kx1, (B, C, H, W), dtype=jnp.float32)
    out = jax.block_until_ready(softpool(x, p))
    ref = softpool_ref(x, p)
    assert out.shape == (B, C, H, 1)
    assert jnp.allclose(out, ref, atol=1e-5, rtol=1e-5)

    # larger B*C: multi-block grid (keeps both v7x TensorCores busy)
    B2, C2 = 8, 96                # BC = 768 -> two 384-row blocks
    x2 = jax.random.normal(kx2, (B2, C2, H, W), dtype=jnp.float32)
    out2 = jax.block_until_ready(softpool(x2, p))
    ref2 = softpool_ref(x2, p)
    assert out2.shape == (B2, C2, H, 1)
    assert jnp.allclose(out2, ref2, atol=1e-5, rtol=1e-5)

    # B*C not a multiple of the tile: ragged last block, masked edge stores
    B3, C3 = 5, 24                # BC = 120 -> blocks of 64 + 56
    x3 = jax.random.normal(kx3, (B3, C3, H, W), dtype=jnp.float32)
    out3 = jax.block_until_ready(softpool(x3, p))
    ref3 = softpool_ref(x3, p)
    assert out3.shape == (B3, C3, H, 1)
    assert jnp.allclose(out3, ref3, atol=1e-5, rtol=1e-5)

    # bf16 HBM I/O (in-kernel math stays f32): halves DMA bytes on all gens
    xb = x2.astype(jnp.bfloat16)
    outb = jax.block_until_ready(softpool(xb, p))
    refb = softpool_ref(xb.astype(jnp.float32), p)
    assert outb.dtype == jnp.bfloat16
    assert jnp.allclose(outb.astype(jnp.float32), refb, atol=2e-2, rtol=2e-2)

    print("KERNEL_OK")
</pallas_src>

<mosaic_0001>
module attributes {stable_mosaic.version = 11 : i64} {
  func.func @softpool_kernel(%arg0: i32, %arg1: memref<1x48xf32, #tpu.memory_space<vmem>>, %arg2: memref<48x4xf32, #tpu.memory_space<vmem>>, %arg3: memref<8x48xf32, #tpu.memory_space<vmem>>, %arg4: memref<8x4xf32, #tpu.memory_space<vmem>>) attributes {dimension_semantics = [#tpu.dimension_semantics<parallel>], iteration_bounds = array<i64: 1>, scalar_prefetch = 0 : i64, scratch_operands = 0 : i64, tpu.core_type = #tpu.core_type<tc>, window_params = [{pipeline_mode = #tpu.pipeline_mode<synchronous>, transform_indices = @transform_0, window_bounds = array<i64: 1, 48>}, {pipeline_mode = #tpu.pipeline_mode<synchronous>, transform_indices = @transform_1, window_bounds = array<i64: 48, 4>}, {transform_indices = @transform_2, window_bounds = array<i64: 8, 48>}, {transform_indices = @transform_3, window_bounds = array<i64: 8, 4>}]} {
    %c0 = arith.constant 0 : index
    %c0_0 = arith.constant 0 : index
    %0 = vector.load %arg3[%c0, %c0_0] : memref<8x48xf32, #tpu.memory_space<vmem>>, vector<8x48xf32>
    %c0_1 = arith.constant 0 : index
    %c0_2 = arith.constant 0 : index
    %1 = vector.load %arg1[%c0_1, %c0_2] : memref<1x48xf32, #tpu.memory_space<vmem>>, vector<1x48xf32>
    %2 = vector.broadcast %1 : vector<1x48xf32> to vector<8x48xf32>
    %3 = arith.mulf %0, %2 : vector<8x48xf32>
    %cst = arith.constant dense<0xFF800000> : vector<8xf32>
    %4 = vector.multi_reduction <maximumf>, %3, %cst [1] : vector<8x48xf32> to vector<8xf32>
    %5 = vector.shape_cast %4 : vector<8xf32> to vector<8x1xf32>
    %6 = vector.broadcast %5 : vector<8x1xf32> to vector<8x48xf32>
    %7 = arith.subf %3, %6 : vector<8x48xf32>
    %8 = math.exp %7 : vector<8x48xf32>
    %cst_3 = arith.constant dense<0.000000e+00> : vector<8xf32>
    %9 = vector.multi_reduction <add>, %8, %cst_3 [1] : vector<8x48xf32> to vector<8xf32>
    %10 = vector.shape_cast %9 : vector<8xf32> to vector<8x1xf32>
    %11 = arith.mulf %0, %8 : vector<8x48xf32>
    %c0_4 = arith.constant 0 : index
    %c0_5 = arith.constant 0 : index
    %12 = vector.load %arg2[%c0_4, %c0_5] : memref<48x4xf32, #tpu.memory_space<vmem>>, vector<48x4xf32>
    %cst_6 = arith.constant dense<0.000000e+00> : vector<8x4xf32>
    %13 = tpu.matmul %11, %12, %cst_6 {dimension_numbers = #tpu.dot_dimension_numbers<[1], [0], [0], [1], [0, 0, 1, 1], [], []>} : vector<8x48xf32>, vector<48x4xf32>, vector<8x4xf32> -> vector<8x4xf32>
    %14 = tpu.reciprocal %10 : vector<8x1xf32> -> vector<8x1xf32>
    %15 = vector.broadcast %14 : vector<8x1xf32> to vector<8x4xf32>
    %16 = arith.mulf %13, %15 : vector<8x4xf32>
    %c0_7 = arith.constant 0 : index
    %c0_8 = arith.constant 0 : index
    %17 = vector.load %arg4[%c0_7, %c0_8] : memref<8x4xf32, #tpu.memory_space<vmem>>, vector<8x4xf32>
    tpu.vector_store %arg4[%c0_7, %c0_8], %16 {strides = array<i32>} : memref<8x4xf32, #tpu.memory_space<vmem>>, vector<8x4xf32>,
    return
  }
  func.func @transform_0(%arg0: i32) -> (i32, i32) {
    %c0_i32 = arith.constant 0 : i32
    %c0_i32_0 = arith.constant 0 : i32
    %c0_i32_1 = arith.constant 0 : i32
    return %c0_i32, %c0_i32_0 : i32, i32
  }
  func.func @transform_1(%arg0: i32) -> (i32, i32) {
    %c0_i32 = arith.constant 0 : i32
    %c0_i32_0 = arith.constant 0 : i32
    %c0_i32_1 = arith.constant 0 : i32
    return %c0_i32, %c0_i32_0 : i32, i32
  }
  func.func @transform_2(%arg0: i32) -> (i32, i32) {
    %c0_i32 = arith.constant 0 : i32
    %c0_i32_0 = arith.constant 0 : i32
    return %arg0, %c0_i32 : i32, i32
  }
  func.func @transform_3(%arg0: i32) -> (i32, i32) {
    %c0_i32 = arith.constant 0 : i32
    %c0_i32_0 = arith.constant 0 : i32
    return %arg0, %c0_i32 : i32, i32
  }
}

</mosaic_0001>

<llo_original>
// kernel: tpu_custom_call.1
$region0: #{tpu_custom_call.1}
  #allocation0 [shape = 'u32[]', space=smem, size = 0x4, offset = 0x4, fixed_abs, tag = 'smem constant byte address 0x4 - core index']
  #allocation1 [shape = 'u32[144,128]{1,0:T(1,128)}', space=vmem, size = 0x12000, scoped, tag = 'internal scratch']
  %s0 = inlined_call_operand.vmem [shape: f32[1,48], index: 0, kind: input, shape index: {}]
  %s1 = inlined_call_operand.vmem [shape: f32[48,4], index: 1, kind: input, shape index: {}]
  %s2 = inlined_call_operand.vmem [shape: f32[8,48], index: 2, kind: input, shape index: {}]
  %s3 = inlined_call_operand.vmem [shape: f32[8,4], index: 3, kind: output, shape index: {}]
  %s4 = sld [smem:[#allocation0]]
  $region22: #{tpu_custom_call.1} parent=0
    _
  %s6 = ssub.s32 1, %s4
  %s7 = scalar_select 0, %s6, %s4
  // Predicated region
  $region2: #{tpu_custom_call.1} parent=0 // pred_check
    _
  $region3: #{tpu_custom_call.1} parent=0 // pred_check_branch
    %9 = sbr.rel (0) target = $region5
  $region4: #{tpu_custom_call.1} parent=0 // pred_region
    _
  $region5: #{tpu_custom_call.1} parent=0 // pred_fallthru
    _
  // Predicated region
  $region6: #{tpu_custom_call.1} parent=0 // pred_check
    _
  $region7: #{tpu_custom_call.1} parent=0 // pred_check_branch
    %11 = sbr.rel (0) target = $region9
  $region8: #{tpu_custom_call.1} parent=0 // pred_region
    _
  $region9: #{tpu_custom_call.1} parent=0 // pred_fallthru
    _
  // Predicated region
  $region10: #{tpu_custom_call.1} parent=0 // pred_check
    _
  $region11: #{tpu_custom_call.1} parent=0 // pred_check_branch
    %13 = sbr.rel (0) target = $region13
  $region12: #{tpu_custom_call.1} parent=0 // pred_region
    _
  $region13: #{tpu_custom_call.1} parent=0 // pred_fallthru
    _
  %v14 = vld [vmem:[%s2] sm:$0xff]
  %v15 = vld [vmem:[%s0] sm:$0x1]
  %v17 = vlaneseq
  %v18 = vshrl.u32 %v17, 7
  %v19 = vsub.s32 0, %v18
  %v20 = vrot.slane %v15, %v19
  %v22 = vmul.f32 %v14, %v20
  %vm23 = vcmask 392192
  %v24 = vsel %vm23, %v22, -inf
  %25 = vmax.xlane.f32.xlu0 %v24
  %v26 = vpop.xlane.xlu0 %25
  %v27 = vsub.f32 %v22, %v26
  %v28 = vmul.f32 %v27, 1.442695
  %v29 = vpow.pop %v28
  %v30 = vsel %vm23, %v29, 0.0
  %31 = vadd.xlane.f32.xlu0 %v30
  %v32 = vpop.xlane.xlu0 %31
  %v33 = vmul.f32 %v14, %v29
  %v34 = vld [vmem:[%s1] sm:$0xff]
  %v35 = vld [vmem:[%s1 + $0x8] sm:$0xff]
  %v36 = vld [vmem:[%s1 + $0x10] sm:$0xff]
  %v37 = vld [vmem:[%s1 + $0x18] sm:$0xff]
  %v38 = vld [vmem:[%s1 + $0x20] sm:$0xff]
  %v39 = vld [vmem:[%s1 + $0x28] sm:$0xff]
  %v41 = vsel %vm23, %v33, 0
  %43 = vmatprep.subr.mxu0 0.0
  %44 = vmatpush1.msra.mxu0 %v34
  %45 = vmatprep.subr.mxu0 0.0
  %46 = vmatpush1.msra.mxu0 %v35
  %47 = vmatprep.subr.mxu0 0.0
  %48 = vmatpush1.msra.mxu0 %v36
  %49 = vmatprep.subr.mxu0 0.0
  %50 = vmatpush1.msra.mxu0 %v37
  %51 = vmatprep.subr.mxu0 0.0
  %52 = vmatpush1.msra.mxu0 %v38
  %53 = vmatprep.subr.mxu0 0.0
  %54 = vmatpush1.msra.mxu0 %v39
  %55 = vmatprep.subr.mxu0 0.0
  %56 = vmatpush1.msra.mxu0 0.0
  %57 = vmatprep.subr.mxu0 0.0
  %58 = vmatpush1.msra.mxu0 0.0
  %59 = vmatprep.subr.mxu0 0.0
  %60 = vmatpush1.msra.mxu0 0.0
  %61 = vmatprep.subr.mxu0 0.0
  %62 = vmatpush1.msra.mxu0 0.0
  %63 = vmatprep.subr.mxu0 0.0
  %64 = vmatpush1.msra.mxu0 0.0
  %65 = vmatprep.subr.mxu0 0.0
  %66 = vmatpush1.msra.mxu0 0.0
  %67 = vmatprep.subr.mxu0 0.0
  %68 = vmatpush1.msra.mxu0 0.0
  %69 = vmatprep.subr.mxu0 0.0
  %70 = vmatpush1.msra.mxu0 0.0
  %71 = vmatprep.subr.mxu0 0.0
  %72 = vmatpush1.msra.mxu0 0.0
  %73 = vmatprep.subr.mxu0 0.0
  %74 = vmatpush1.msra.mxu0 0.0
  %75 = vmatprep.subr.mxu0 0.0
  %76 = vmatpush1.msra.mxu0 0.0
  %77 = vmatprep.subr.mxu0 0.0
  %78 = vmatpush1.msra.mxu0 0.0
  %79 = vmatprep.subr.mxu0 0.0
  %80 = vmatpush1.msra.mxu0 0.0
  %81 = vmatprep.subr.mxu0 0.0
  %82 = vmatpush1.msra.mxu0 0.0
  %83 = vmatprep.subr.mxu0 0.0
  %84 = vmatpush1.msra.mxu0 0.0
  %85 = vmatprep.subr.mxu0 0.0
  %86 = vmatpush1.msra.mxu0 0.0
  %87 = vmatprep.subr.mxu0 0.0
  %88 = vmatpush1.msra.mxu0 0.0
  %89 = vmatprep.subr.mxu0 0.0
  %90 = vmatpush1.msra.mxu0 0.0
  %91 = vmatprep.subr.mxu0 0.0
  %92 = vmatpush1.msra.mxu0 0.0
  %93 = vmatprep.subr.mxu0 0.0
  %94 = vmatpush1.msra.mxu0 0.0
  %95 = vmatprep.subr.mxu0 0.0
  %96 = vmatpush1.msra.mxu0 0.0
  %97 = vmatprep.subr.mxu0 0.0
  %98 = vmatpush1.msra.mxu0 0.0
  %99 = vmatprep.subr.mxu0 0.0
  %100 = vmatpush1.msra.mxu0 0.0
  %101 = vmatprep.subr.mxu0 0.0
  %102 = vmatpush1.msra.mxu0 0.0
  %103 = vmatprep.subr.mxu0 0.0
  %104 = vmatpush1.msra.mxu0 0.0
  %105 = vmatprep.subr.mxu0 0.0
  %106 = vmatpush1.msra.mxu0 0.0
  %107 = vmatprep.mubr.f32.mxu0 0.0
  %108 = vmatmul.mubr.f32.gmra.mrb[0].mxu0 %v41
  %v109 = vpop.f32.mrb[0].mxu0
  %v110 = vadd.f32 0.0, %v109
  %v111 = vpop.f32.mrb[0].mxu0
  %112 = vdwg.mxu0
  %v113 = vrcp.pop %v32
  %v114 = vmul.f32 %v110, %v113
  %vm115 = vcmask 31744
  %116 = vst.msk [vmem:[%s3] sm:$0xff] %vm115, %v114
  // Predicated region
  $region14: #{tpu_custom_call.1} parent=0 // pred_check
    _
  $region15: #{tpu_custom_call.1} parent=0 // pred_check_branch
    %118 = sbr.rel (0) target = $region17
  $region16: #{tpu_custom_call.1} parent=0 // pred_region
    _
  $region17: #{tpu_custom_call.1} parent=0 // pred_fallthru
    _
  // Predicated region
  $region18: #{tpu_custom_call.1} parent=0 // pred_check
    _
  $region19: #{tpu_custom_call.1} parent=0 // pred_check_branch
    %120 = sbr.rel (0) target = $region21
  $region20: #{tpu_custom_call.1} parent=0 // pred_region
    _
  $region21: #{tpu_custom_call.1} parent=0 // pred_fallthru
    _

</llo_original>
